<compile_context>
chip_gen: v7x
topology: tpu7x:2x2x1
jax: 0.10.0
libtpu: 0.0.40
codegen_flags: <defaults>
</compile_context>

<pallas_src>
import functools

import jax
import jax.numpy as jnp
from jax.experimental import pallas as pl
from jax.experimental.pallas import tpu as pltpu

_LANE = 128
_SUBLANE = 8


def _round_up(x, m):
    return ((x + m - 1) // m) * m


def _chip_budget():
    """(vmem_limit_bytes, two_tensorcores) — conservative per-core numbers."""
    kind = ""
    try:
        kind = jax.devices()[0].device_kind.lower()
    except Exception:
        pass
    if ("v5" in kind) or ("v6" in kind):
        # Single TensorCore, 128 MiB physical VMEM: raise the scoped limit
        # well above the 16/32 MiB default but leave headroom.
        limit, two_tc = 100 * 1024 * 1024, False
    else:
        # v7x (2 TCs, 64 MiB per core) or unknown chip: stay safely inside
        # the per-core capacity even if queries report chip-level VMEM.
        limit, two_tc = 52 * 1024 * 1024, True
    try:
        cap = getattr(pltpu.get_tpu_info(), "vmem_capacity_bytes", None)
        if cap:
            limit = min(limit, int(0.85 * int(cap)))
    except Exception:
        pass
    return limit, two_tc


# --------------------- one-pass kernel (normal utterances) ------------------

def _cmvn_onepass_kernel(x_ref, o_ref, *, eps, inv_n, inv_nm1):
    """Normalize a (T, tile) slab with the full time axis resident in VMEM."""
    x = x_ref[...].astype(jnp.float32)
    mean = jnp.sum(x, axis=0, keepdims=True) * inv_n              # (1, tile)
    # Exact two-sweep variance; (x - mean) is not kept live to the store.
    var = jnp.sum((x - mean) * (x - mean), axis=0, keepdims=True) * inv_nm1
    # One reciprocal per feature column, then VPU broadcast multiplies.
    inv = 1.0 / (eps + jnp.sqrt(var))
    o_ref[...] = ((x - mean) * inv).astype(o_ref.dtype)


def _cmvn_one_pass(x, eps, feat_tile, vmem_limit):
    T, F = x.shape
    itemsize = jnp.dtype(x.dtype).itemsize
    inv_n = 1.0 / T
    inv_nm1 = (1.0 / (T - 1)) if T > 1 else float("inf")  # T==1 -> nan (torch)
    kernel = functools.partial(_cmvn_onepass_kernel, eps=float(eps),
                               inv_n=inv_n, inv_nm1=inv_nm1)
    n_feat = pl.cdiv(F, feat_tile)   # partial last tile is masked by Pallas
    cost = pl.CostEstimate(
        flops=int(6 * T * F),
        transcendentals=int(2 * F),
        bytes_accessed=int(2 * T * F * itemsize),
    )
    return pl.pallas_call(
        kernel,
        out_shape=jax.ShapeDtypeStruct((T, F), x.dtype),
        grid_spec=pltpu.PrefetchScalarGridSpec(
            num_scalar_prefetch=0,
            grid=(n_feat,),
            in_specs=[pl.BlockSpec((T, feat_tile), lambda j: (0, j))],
            out_specs=pl.BlockSpec((T, feat_tile), lambda j: (0, j)),
        ),
        compiler_params=pltpu.CompilerParams(
            dimension_semantics=("parallel",),
            vmem_limit_bytes=int(vmem_limit),
        ),
        cost_estimate=cost,
    )(x)


# ----------------- two-pass fallback (very long time axis) ------------------

def _stats_kernel(x_ref, x0_ref, sum_ref, sq_ref, *, time_tile, T):
    # grid = (feature tiles [parallel], time tiles [arbitrary, accumulated])
    t = pl.program_id(1)

    @pl.when(t == 0)
    def _():
        sum_ref[...] = jnp.zeros_like(sum_ref)
        sq_ref[...] = jnp.zeros_like(sq_ref)

    x = x_ref[...].astype(jnp.float32)
    # Shifted accumulation (subtract row 0) avoids E[x^2]-E[x]^2 cancellation.
    d = x - x0_ref[...].astype(jnp.float32)
    # Mask rows past T: the partial last time tile reads undefined data.
    rows = t * time_tile + jax.lax.broadcasted_iota(jnp.int32, d.shape, 0)
    d = jnp.where(rows < T, d, 0.0)
    sum_ref[...] += jnp.sum(d, axis=0, keepdims=True)
    sq_ref[...] += jnp.sum(d * d, axis=0, keepdims=True)


def _normalize_kernel(x_ref, x0_ref, sum_ref, sq_ref, o_ref, *,
                      eps, inv_n, inv_nm1):
    # Per-feature mean / inv-std derived in-kernel from the shifted sums —
    # no tiny XLA dispatches between the two pallas_calls.
    s = sum_ref[...]
    mean_shift = s * inv_n
    var = jnp.maximum(sq_ref[...] - s * mean_shift, 0.0) * inv_nm1
    inv = 1.0 / (eps + jnp.sqrt(var))
    mean = x0_ref[...].astype(jnp.float32) + mean_shift
    o_ref[...] = ((x_ref[...].astype(jnp.float32) - mean) * inv).astype(o_ref.dtype)


def _cmvn_two_pass(x, eps, budget, vmem_limit, two_tc):
    T, F = x.shape
    itemsize = jnp.dtype(x.dtype).itemsize

    # Feature tile: full-F block when F <= 128 (exempt from the lane rule);
    # otherwise a lane multiple.  On 2-TC chips keep >= 2 feature tiles so
    # the 'parallel' feature axis shards across both cores; on 1-TC chips
    # keep tiles big (time axis already provides pipelining steps).
    if F <= _LANE:
        feat_tile = F
    else:
        cap = (F // _LANE) * _LANE
        if two_tc and F >= 2 * _LANE:
            cap = min(cap, max(_LANE, (F // 2) // _LANE * _LANE))
        feat_tile = max(_LANE, min(512, cap))
    n_feat = pl.cdiv(F, feat_tile)

    # Time tile from the VMEM budget (normalize pass dominates: 2x in + 2x
    # out blocks double-buffered + ~2 f32 temporaries per element).
    per_row = feat_tile * (4 * itemsize + 2 * 4)
    time_tile = max((budget // max(per_row, 1)) // _SUBLANE * _SUBLANE, _SUBLANE)
    time_tile = min(time_tile, _round_up(T, _SUBLANE))
    n_time = pl.cdiv(T, time_tile)
    grid = (n_feat, n_time)

    x0 = x[0:1, :]                      # (1, F) shift row — tiny slice
    inv_n = 1.0 / T
    inv_nm1 = (1.0 / (T - 1)) if T > 1 else float("inf")

    stats_cost = pl.CostEstimate(
        flops=int(5 * T * F),
        transcendentals=0,
        bytes_accessed=int(T * F * itemsize + 3 * F * 4),
    )
    sums, sqs = pl.pallas_call(
        functools.partial(_stats_kernel, time_tile=time_tile, T=T),
        out_shape=[jax.ShapeDtypeStruct((1, F), jnp.float32),
                   jax.ShapeDtypeStruct((1, F), jnp.float32)],
        grid_spec=pltpu.PrefetchScalarGridSpec(
            num_scalar_prefetch=0,
            grid=grid,
            in_specs=[pl.BlockSpec((time_tile, feat_tile), lambda j, t: (t, j)),
                      pl.BlockSpec((1, feat_tile), lambda j, t: (0, j))],
            out_specs=[pl.BlockSpec((1, feat_tile), lambda j, t: (0, j)),
                       pl.BlockSpec((1, feat_tile), lambda j, t: (0, j))],
        ),
        compiler_params=pltpu.CompilerParams(
            dimension_semantics=("parallel", "arbitrary"),
            vmem_limit_bytes=int(vmem_limit),
        ),
        cost_estimate=stats_cost,
    )(x, x0)

    norm_cost = pl.CostEstimate(
        flops=int(4 * T * F),
        transcendentals=int(2 * F * n_time),
        bytes_accessed=int(2 * T * F * itemsize + 3 * F * 4),
    )
    return pl.pallas_call(
        functools.partial(_normalize_kernel, eps=float(eps),
                          inv_n=inv_n, inv_nm1=inv_nm1),
        out_shape=jax.ShapeDtypeStruct((T, F), x.dtype),
        grid_spec=pltpu.PrefetchScalarGridSpec(
            num_scalar_prefetch=0,
            grid=grid,
            in_specs=[pl.BlockSpec((time_tile, feat_tile), lambda j, t: (t, j)),
                      pl.BlockSpec((1, feat_tile), lambda j, t: (0, j)),
                      pl.BlockSpec((1, feat_tile), lambda j, t: (0, j)),
                      pl.BlockSpec((1, feat_tile), lambda j, t: (0, j))],
            out_specs=pl.BlockSpec((time_tile, feat_tile), lambda j, t: (t, j)),
        ),
        compiler_params=pltpu.CompilerParams(
            dimension_semantics=("parallel", "parallel"),
            vmem_limit_bytes=int(vmem_limit),
        ),
        cost_estimate=norm_cost,
    )(x, x0, sums, sqs)


# --------------------------------- wrapper ----------------------------------

def cmvn(x, eps=1e-10, *, vmem_budget_bytes=None):
    """CMVN over dim 0: (x - mean) / (eps + std), std unbiased (ddof=1).

    Matches the torch module, including nan output when T == 1.
    """
    if x.ndim != 2:
        raise ValueError("cmvn expects a (time, feature) 2-D input")
    T, F = x.shape
    itemsize = jnp.dtype(x.dtype).itemsize

    vmem_limit, two_tc = _chip_budget()
    budget = (int(vmem_budget_bytes) if vmem_budget_bytes is not None
              else int(0.6 * vmem_limit))
    # Grid-step target: 2 per TensorCore on 2-TC chips, 2 total on 1-TC chips.
    target_steps = 4 if two_tc else 2

    # One-pass footprint per feature column: 2x in + 2x out blocks (double
    # buffered) + ~2 f32 temporaries.
    bytes_per_col = T * (4 * itemsize + 2 * 4)
    max_cols = budget // max(bytes_per_col, 1)

    if F <= _LANE:
        if max_cols >= F:
            # Canonical small-F case (e.g. 80 mel bins): one full-F block,
            # no padding, minimal HBM traffic.
            return _cmvn_one_pass(x, eps, F, vmem_limit)
    else:
        max_tile = (max_cols // _LANE) * _LANE
        if max_tile >= _LANE:
            steps_cap = max(_LANE, (F // target_steps) // _LANE * _LANE)
            feat_tile = max(_LANE, min(max_tile, steps_cap))
            return _cmvn_one_pass(x, eps, feat_tile, vmem_limit)

    # Very long T: full time axis can't sit in VMEM -> bounded-VMEM two-pass.
    return _cmvn_two_pass(x, eps, budget, vmem_limit, two_tc)


def cmvn_ref(x, eps=1e-10):
    mean = jnp.mean(x, axis=0, keepdims=True)
    var = jnp.sum((x - mean) ** 2, axis=0, keepdims=True) / (x.shape[0] - 1)
    return (x - mean) / (eps + jnp.sqrt(var))


if __name__ == "__main__":
    k1, k2, k3 = jax.random.split(jax.random.PRNGKey(0), 3)

    # Canonical CMVN shape: ragged feature dim (80 mel bins), no padding.
    T1, F1 = 64, 80
    x1 = jax.random.normal(k1, (T1, F1), dtype=jnp.float32) * 3.0 + 1.5
    out1 = cmvn(x1)
    jax.block_until_ready(out1)
    assert out1.shape == x1.shape and out1.dtype == x1.dtype
    assert jnp.allclose(out1, cmvn_ref(x1), atol=1e-5, rtol=1e-5), \
        "one-pass (full-F) mismatch"

    # Lane-aligned feature dim -> tiled one-pass path.
    T2, F2 = 48, 256
    x2 = jax.random.normal(k2, (T2, F2), dtype=jnp.float32) * 2.0 - 0.7
    out2 = cmvn(x2)
    jax.block_until_ready(out2)
    assert jnp.allclose(out2, cmvn_ref(x2), atol=1e-5, rtol=1e-5), \
        "one-pass (tiled) mismatch"

    # Force the bounded-VMEM two-pass fallback on a ragged (T, F) shape so
    # the partial feature tile and masked time tail paths are exercised.
    T3, F3 = 300, 200
    x3 = jax.random.normal(k3, (T3, F3), dtype=jnp.float32) * 2.0 + 0.3
    out3 = cmvn(x3, vmem_budget_bytes=64 * 1024)
    jax.block_until_ready(out3)
    assert out3.shape == x3.shape and out3.dtype == x3.dtype
    assert jnp.allclose(out3, cmvn_ref(x3), atol=1e-4, rtol=1e-4), \
        "two-pass mismatch"

    print("KERNEL_OK")
</pallas_src>

<mosaic_0001>
module attributes {stable_mosaic.version = 11 : i64} {
  func.func @_cmvn_onepass_kernel(%arg0: i32, %arg1: memref<64x80xf32, #tpu.memory_space<vmem>>, %arg2: memref<64x80xf32, #tpu.memory_space<vmem>>) attributes {dimension_semantics = [#tpu.dimension_semantics<parallel>], iteration_bounds = array<i64: 1>, scalar_prefetch = 0 : i64, scratch_operands = 0 : i64, tpu.core_type = #tpu.core_type<tc>, window_params = [{transform_indices = @transform_0, window_bounds = array<i64: 64, 80>}, {transform_indices = @transform_1, window_bounds = array<i64: 64, 80>}]} {
    %c0 = arith.constant 0 : index
    %c0_0 = arith.constant 0 : index
    %0 = vector.load %arg1[%c0, %c0_0] : memref<64x80xf32, #tpu.memory_space<vmem>>, vector<64x80xf32>
    %cst = arith.constant dense<0.000000e+00> : vector<80xf32>
    %1 = vector.multi_reduction <add>, %0, %cst [0] : vector<64x80xf32> to vector<80xf32>
    %2 = vector.shape_cast %1 : vector<80xf32> to vector<1x80xf32>
    %cst_1 = arith.constant 1.562500e-02 : f32
    %3 = vector.broadcast %cst_1 : f32 to vector<1x80xf32>
    %4 = arith.mulf %2, %3 : vector<1x80xf32>
    %5 = vector.broadcast %4 : vector<1x80xf32> to vector<64x80xf32>
    %6 = arith.subf %0, %5 : vector<64x80xf32>
    %7 = vector.broadcast %4 : vector<1x80xf32> to vector<64x80xf32>
    %8 = arith.subf %0, %7 : vector<64x80xf32>
    %9 = arith.mulf %6, %8 : vector<64x80xf32>
    %cst_2 = arith.constant dense<0.000000e+00> : vector<80xf32>
    %10 = vector.multi_reduction <add>, %9, %cst_2 [0] : vector<64x80xf32> to vector<80xf32>
    %11 = vector.shape_cast %10 : vector<80xf32> to vector<1x80xf32>
    %cst_3 = arith.constant 0.0158730168 : f32
    %12 = vector.broadcast %cst_3 : f32 to vector<1x80xf32>
    %13 = arith.mulf %11, %12 : vector<1x80xf32>
    %14 = math.sqrt %13 : vector<1x80xf32>
    %cst_4 = arith.constant 1.000000e-10 : f32
    %15 = vector.broadcast %cst_4 : f32 to vector<1x80xf32>
    %16 = arith.addf %15, %14 : vector<1x80xf32>
    %cst_5 = arith.constant 1.000000e+00 : f32
    %17 = vector.broadcast %cst_5 : f32 to vector<1x80xf32>
    %18 = arith.divf %17, %16 : vector<1x80xf32>
    %19 = vector.broadcast %4 : vector<1x80xf32> to vector<64x80xf32>
    %20 = arith.subf %0, %19 : vector<64x80xf32>
    %21 = vector.broadcast %18 : vector<1x80xf32> to vector<64x80xf32>
    %22 = arith.mulf %20, %21 : vector<64x80xf32>
    %c0_6 = arith.constant 0 : index
    %c0_7 = arith.constant 0 : index
    %23 = vector.load %arg2[%c0_6, %c0_7] : memref<64x80xf32, #tpu.memory_space<vmem>>, vector<64x80xf32>
    tpu.vector_store %arg2[%c0_6, %c0_7], %22 {strides = array<i32>} : memref<64x80xf32, #tpu.memory_space<vmem>>, vector<64x80xf32>,
    return
  }
  func.func @transform_0(%arg0: i32) -> (i32, i32) {
    %c0_i32 = arith.constant 0 : i32
    %c0_i32_0 = arith.constant 0 : i32
    return %c0_i32, %arg0 : i32, i32
  }
  func.func @transform_1(%arg0: i32) -> (i32, i32) {
    %c0_i32 = arith.constant 0 : i32
    %c0_i32_0 = arith.constant 0 : i32
    return %c0_i32, %arg0 : i32, i32
  }
}

</mosaic_0001>

<llo_original>
// kernel: tpu_custom_call.1
$region0: #{tpu_custom_call.1}
  #allocation0 [shape = 'u32[]', space=smem, size = 0x4, offset = 0x4, fixed_abs, tag = 'smem constant byte address 0x4 - core index']
  #allocation1 [shape = 'u32[144,128]{1,0:T(1,128)}', space=vmem, size = 0x12000, scoped, tag = 'internal scratch']
  %s0 = inlined_call_operand.hbm [shape: f32[64,80], index: 0, kind: input, shape index: {}]
  %s1 = inlined_call_operand.hbm [shape: f32[64,80], index: 1, kind: output, shape index: {}]
  %s2 = sld [smem:[#allocation0]]
  $region18: #{tpu_custom_call.1} parent=0
    _
  %s4 = ssub.s32 1, %s2
  %s5 = scalar_select 0, %s4, %s2
  $region1: #{tpu_custom_call.1} parent=0
    #allocation2 [shape = 'u8[32768]{0}', space=vmem, size = 0x8000, scoped, tag = 'input window, operand 0, single buffered']
    #allocation3 [shape = 's32[1]{0}', space=sflag, size = 0x4, scoped, tag = 'scoped memory for tpu_custom_call.1']
    #allocation4 [shape = 's32[1]{0}', space=sflag, size = 0x4, scoped, tag = 'scoped memory for tpu_custom_call.1']
    #allocation5 [shape = 'u8[32768]{0}', space=vmem, size = 0x8000, scoped, tag = 'output window, operand 0, single buffered']
    %6 = vsyncpa [#allocation3], 0
    %7 = vsyncpa [#allocation4], 0
    // Predicated region
    $region2: #{tpu_custom_call.1} parent=1 // pred_check
      _
    $region3: #{tpu_custom_call.1} parent=1 // pred_check_branch
      %9 = sbr.rel (0) target = $region5
    $region4: #{tpu_custom_call.1} parent=1 // pred_region
      %s11 = ssub.s32 1024, 1024
      %12 = vsyncadd [#allocation3], %s11
      %s13 = sshll.u32 [#allocation2], 4
      %s14 = int_to_ptr.vmem [resolvable:$true] %s13
      %19 = dma.hbm_to_vmem [thread:$0]  %s0, 1024, %s14, [#allocation3], 128, 128, 8
    $region5: #{tpu_custom_call.1} parent=1 // pred_fallthru
      _
    // Predicated region
    $region6: #{tpu_custom_call.1} parent=1 // pred_check
      _
    $region7: #{tpu_custom_call.1} parent=1 // pred_check_branch
      %21 = sbr.rel (0) target = $region9
    $region8: #{tpu_custom_call.1} parent=1 // pred_region
      %22 = dma.done [#allocation3], 1024
    $region9: #{tpu_custom_call.1} parent=1 // pred_fallthru
      _
    %v23 = vld [vmem:[#allocation2] sm:$0xff]
    %v24 = vld [vmem:[#allocation2 + $0x8] sm:$0xff]
    %v25 = vld [vmem:[#allocation2 + $0x10] sm:$0xff]
    %v26 = vld [vmem:[#allocation2 + $0x18] sm:$0xff]
    %v27 = vld [vmem:[#allocation2 + $0x20] sm:$0xff]
    %v28 = vld [vmem:[#allocation2 + $0x28] sm:$0xff]
    %v29 = vld [vmem:[#allocation2 + $0x30] sm:$0xff]
    %v30 = vld [vmem:[#allocation2 + $0x38] sm:$0xff]
    %vm31 = vcmask 654336
    %v32 = vsel %vm31, %v23, 0.0
    %v33 = vsel %vm31, %v24, 0.0
    %v34 = vadd.f32 %v32, %v33
    %v35 = vsel %vm31, %v25, 0.0
    %v36 = vadd.f32 %v34, %v35
    %v37 = vsel %vm31, %v26, 0.0
    %v38 = vadd.f32 %v36, %v37
    %v39 = vsel %vm31, %v27, 0.0
    %v40 = vadd.f32 %v38, %v39
    %v41 = vsel %vm31, %v28, 0.0
    %v42 = vadd.f32 %v40, %v41
    %v43 = vsel %vm31, %v29, 0.0
    %v44 = vadd.f32 %v42, %v43
    %v45 = vsel %vm31, %v30, 0.0
    %v46 = vadd.f32 %v44, %v45
    %v47 = vrot.slane %v46, 4
    %v48 = vadd.f32 %v46, %v47
    %v49 = vrot.slane %v48, 2
    %v50 = vadd.f32 %v48, %v49
    %v51 = vrot.slane %v50, 1
    %v52 = vadd.f32 %v50, %v51
    %v53 = vmul.f32 %v52, 0.015625
    %v54 = vsub.f32 %v23, %v53
    %v55 = vsub.f32 %v24, %v53
    %v56 = vsub.f32 %v25, %v53
    %v57 = vsub.f32 %v26, %v53
    %v58 = vsub.f32 %v27, %v53
    %v59 = vsub.f32 %v28, %v53
    %v60 = vsub.f32 %v29, %v53
    %v61 = vsub.f32 %v30, %v53
    %v62 = vmul.f32 %v54, %v54
    %v63 = vmul.f32 %v55, %v55
    %v64 = vmul.f32 %v56, %v56
    %v65 = vmul.f32 %v57, %v57
    %v66 = vmul.f32 %v58, %v58
    %v67 = vmul.f32 %v59, %v59
    %v68 = vmul.f32 %v60, %v60
    %v69 = vmul.f32 %v61, %v61
    %v70 = vsel %vm31, %v62, 0.0
    %v71 = vsel %vm31, %v63, 0.0
    %v72 = vadd.f32 %v70, %v71
    %v73 = vsel %vm31, %v64, 0.0
    %v74 = vadd.f32 %v72, %v73
    %v75 = vsel %vm31, %v65, 0.0
    %v76 = vadd.f32 %v74, %v75
    %v77 = vsel %vm31, %v66, 0.0
    %v78 = vadd.f32 %v76, %v77
    %v79 = vsel %vm31, %v67, 0.0
    %v80 = vadd.f32 %v78, %v79
    %v81 = vsel %vm31, %v68, 0.0
    %v82 = vadd.f32 %v80, %v81
    %v83 = vsel %vm31, %v69, 0.0
    %v84 = vadd.f32 %v82, %v83
    %v85 = vrot.slane %v84, 4
    %v86 = vadd.f32 %v84, %v85
    %v87 = vrot.slane %v86, 2
    %v88 = vadd.f32 %v86, %v87
    %v89 = vrot.slane %v88, 1
    %v90 = vadd.f32 %v88, %v89
    %v91 = vmul.f32 %v90, 0.015873017
    %v92 = vrsqrt.pop %v91
    %v93 = vmul.f32 %v91, %v92
    %vm94 = vcmp.eq.f32.partialorder %v91, inf
    %v95 = vsel %vm94, %v91, %v93
    %vm96 = vcmp.eq.f32.partialorder %v91, 0.0
    %v97 = vand.u32 %v91, 2147483648
    %v98 = vsel %vm96, %v97, %v95
    %v99 = vadd.f32 %v98, 1e-10
    %v100 = vrcp.pop %v99
    %v101 = vmul.f32 1.0, %v100
    %v102 = vmul.f32 %v54, %v101
    %v103 = vmul.f32 %v55, %v101
    %v104 = vmul.f32 %v56, %v101
    %v105 = vmul.f32 %v57, %v101
    %v106 = vmul.f32 %v58, %v101
    %v107 = vmul.f32 %v59, %v101
    %v108 = vmul.f32 %v60, %v101
    %v109 = vmul.f32 %v61, %v101
    %110 = vst.msk [vmem:[#allocation5] sm:$0xff] %vm31, %v102
    %111 = vst.msk [vmem:[#allocation5 + $0x8] sm:$0xff] %vm31, %v103
    %112 = vst.msk [vmem:[#allocation5 + $0x10] sm:$0xff] %vm31, %v104
    %113 = vst.msk [vmem:[#allocation5 + $0x18] sm:$0xff] %vm31, %v105
    %114 = vst.msk [vmem:[#allocation5 + $0x20] sm:$0xff] %vm31, %v106
    %115 = vst.msk [vmem:[#allocation5 + $0x28] sm:$0xff] %vm31, %v107
    %116 = vst.msk [vmem:[#allocation5 + $0x30] sm:$0xff] %vm31, %v108
    %117 = vst.msk [vmem:[#allocation5 + $0x38] sm:$0xff] %vm31, %v109
    // Predicated region
    $region10: #{tpu_custom_call.1} parent=1 // pred_check
      _
    $region11: #{tpu_custom_call.1} parent=1 // pred_check_branch
      %119 = sbr.rel (0) target = $region13
    $region12: #{tpu_custom_call.1} parent=1 // pred_region
      %s121 = ssub.s32 1024, 1024
      %122 = vsyncadd [#allocation4], %s121
      %s123 = sshll.u32 [#allocation5], 4
      %s124 = int_to_ptr.vmem [resolvable:$true] %s123
      %129 = dma.vmem_to_hbm [thread:$0]  %s124, 1024, %s1, [#allocation4], 128, 128, 8
    $region13: #{tpu_custom_call.1} parent=1 // pred_fallthru
      _
    // Predicated region
    $region14: #{tpu_custom_call.1} parent=1 // pred_check
      _
    $region15: #{tpu_custom_call.1} parent=1 // pred_check_branch
      %131 = sbr.rel (0) target = $region17
    $region16: #{tpu_custom_call.1} parent=1 // pred_region
      %132 = dma.done [#allocation4], 1024
    $region17: #{tpu_custom_call.1} parent=1 // pred_fallthru
      _
    %133 = vsyncpa [#allocation3], 1
    %134 = vsyncpa [#allocation4], 1

</llo_original>
